<compile_context>
chip_gen: v5e
topology: v5e:2x2
jax: 0.10.0
libtpu: 0.0.40
codegen_flags: <defaults>
</compile_context>

<pallas_src>
import functools

import jax
import jax.numpy as jnp
from jax import lax
from jax.experimental import pallas as pl
from jax.experimental.pallas import tpu as pltpu

# F.cosine_similarity clamps the *product* of norms by eps; we clamp each row
# norm (identical for non-degenerate inputs).
_EPS = 1e-8
_NEG_INF = -1e30


def _ntxent_lse_kernel(q_ref, k_ref, o_ref, m_ref, l_ref):
    """One (row_tile, col_tile) grid step: online LSE of the masked similarity."""
    c = pl.program_id(1)
    tq = q_ref.shape[0]
    tc = k_ref.shape[0]

    @pl.when(c == 0)
    def _init():
        m_ref[...] = jnp.full_like(m_ref, -jnp.inf)
        l_ref[...] = jnp.zeros_like(l_ref)

    # (tq, tc) similarity tile: bf16 MXU matmul with f32 accumulation.  Inputs
    # are pre-normalized in the wrapper and 1/temperature is folded into the
    # query operand, so no normalization/scaling work remains per step.
    sim = lax.dot_general(q_ref[...], k_ref[...], (((1,), (1,)), ((), ())),
                          preferred_element_type=jnp.float32)

    # Mask the self-similarity (diagonal of the global (2B, 2B) matrix).
    row_g = pl.program_id(0) * tq + lax.broadcasted_iota(jnp.int32, (tq, tc), 0)
    col_g = c * tc + lax.broadcasted_iota(jnp.int32, (tq, tc), 1)
    sim = jnp.where(row_g == col_g, jnp.float32(_NEG_INF), sim)

    # Online log-sum-exp across the column (key) tiles.
    m_prev = m_ref[...]
    m_new = jnp.maximum(m_prev, jnp.max(sim, axis=-1, keepdims=True))
    l_ref[...] = (jnp.exp(m_prev - m_new) * l_ref[...]
                  + jnp.sum(jnp.exp(sim - m_new), axis=-1, keepdims=True))
    m_ref[...] = m_new

    @pl.when(c == pl.num_programs(1) - 1)
    def _finalize():
        o_ref[...] = m_ref[...] + jnp.log(l_ref[...])


def _vmem_capacity_bytes():
    """Physical VMEM of the current TPU generation (conservative fallback)."""
    try:
        cap = int(pltpu.get_tpu_info().vmem_capacity_bytes)
        if cap > 0:
            return cap
    except Exception:
        pass
    return 64 << 20   # v7x-sized fallback: safe on every listed generation


def _tile_bytes(tq, tc, dp):
    """Conservative VMEM estimate for one (tq, tc) tiling choice."""
    return (2 * tq * dp * 2          # query tiles (bf16, double-buffered)
            + 2 * tc * dp * 2        # key tiles (bf16, double-buffered)
            + 4 * tq * tc * 4        # f32 sim / exp / iota-mask temporaries
            + 2 * tq * 128 * 4       # m/l scratch ((tq,1) f32, lane-padded)
            + 2 * tq * 128 * 4)      # (tq,1) output blocks (lane-padded, 2 bufs)


def _pick_tile(n, cap, grans=(256, 128, 8)):
    """Largest divisor of n that is <= cap, preferring MXU-friendly granularity."""
    cap = max(8, min(cap, n))
    for g in grans:
        t = (cap // g) * g
        while t >= g:
            if n % t == 0:
                return t
            t -= g
    return 8  # unreachable when 8 | n


def _choose_tiles(n, dp, budget):
    """Pick (tq, tc): biggest tiles (resident keys first) that fit the budget."""
    prefs = [(512, n),               # resident keys: key matrix DMA'd once
             (512, 4096), (512, 2048), (256, 2048), (256, 1024),
             (128, 1024), (128, 512), (128, 256), (64, 256),
             (32, 128), (16, 64), (8, 16), (8, 8)]
    for tq_cap, tc_cap in prefs:
        tq = _pick_tile(n, tq_cap)
        tc = _pick_tile(n, tc_cap)
        if _tile_bytes(tq, tc, dp) <= budget:
            return tq, tc
    return 8, 8


@functools.partial(jax.jit, static_argnums=(2,))
def ntxent_loss(z_i, z_j, temperature):
    """NT-Xent loss. z_i, z_j: (B, D). Returns scalar float32 loss."""
    b, d = z_i.shape
    if b % 8:
        # TODO(synk): batches that are not multiples of 8 would need row padding
        # plus masking of the padded rows in the softmax; not needed here.
        raise NotImplementedError("ntxent_loss requires batch_size % 8 == 0")
    n = 2 * b
    inv_t = 1.0 / float(temperature)

    # ---- wrapper preprocessing: one fused O(N*D) XLA pass -------------------
    feats = jnp.concatenate([z_i, z_j], axis=0).astype(jnp.float32)      # (n, d)
    inv_norm = lax.rsqrt(jnp.maximum(jnp.sum(feats * feats, axis=-1, keepdims=True),
                                     _EPS * _EPS))
    fn = feats * inv_norm                                                # unit rows

    # positive logit of row i = <fn_i, fn_{(i+B) mod 2B}> / T  (O(N*D), subtracted
    # from the kernel's per-row LSE below -- no partner stream inside the kernel).
    pos = jnp.sum(fn * jnp.roll(fn, b, axis=0), axis=-1) * inv_t         # (n,)

    # zero-pad features to a 128-lane multiple (doesn't change norms/dots).
    dp = ((d + 127) // 128) * 128
    if dp != d:
        fn = jnp.pad(fn, ((0, 0), (0, dp - d)))
    keys = fn.astype(jnp.bfloat16)                                       # (n, dp)
    queries = (fn * inv_t).astype(jnp.bfloat16)                          # (n, dp)

    # ---- generation-aware tiling --------------------------------------------
    vmem_cap = _vmem_capacity_bytes()                 # 128 MiB v5e/v6e, 64 MiB v7x
    budget = min(int(vmem_cap * 0.55), 80 << 20)      # tile-selection budget
    tq, tc = _choose_tiles(n, dp, budget)
    nq, nc = n // tq, n // tc

    need = _tile_bytes(tq, tc, dp)
    vmem_limit = int(min(vmem_cap * 0.70, max(2 * need + (16 << 20), 32 << 20)))

    lse = pl.pallas_call(
        _ntxent_lse_kernel,
        out_shape=jax.ShapeDtypeStruct((n, 1), jnp.float32),
        grid=(nq, nc),
        in_specs=[
            pl.BlockSpec((tq, dp), lambda q, c: (q, 0)),   # query rows (bf16, /T)
            pl.BlockSpec((tc, dp), lambda q, c: (c, 0)),   # key rows (bf16)
        ],
        out_specs=pl.BlockSpec((tq, 1), lambda q, c: (q, 0)),
        scratch_shapes=[
            pltpu.VMEM((tq, 1), jnp.float32),   # running max
            pltpu.VMEM((tq, 1), jnp.float32),   # running sum(exp)
        ],
        compiler_params=pltpu.CompilerParams(
            dimension_semantics=("parallel", "arbitrary"),
            vmem_limit_bytes=vmem_limit,
        ),
    )(queries, keys)

    return jnp.mean(lse[:, 0] - pos)


def _ntxent_reference(z_i, z_j, temperature, eps=_EPS, use_bf16=True):
    """Pure-JAX reference (same masked-diagonal formulation).

    use_bf16=True mirrors the kernel's bf16 MXU inputs (f32 accumulation);
    use_bf16=False is the exact f32 formulation for a looser sanity check.
    """
    b = z_i.shape[0]
    n = 2 * b
    inv_t = 1.0 / float(temperature)
    f = jnp.concatenate([z_i, z_j], axis=0).astype(jnp.float32)
    fn = f * lax.rsqrt(jnp.maximum(jnp.sum(f * f, axis=-1, keepdims=True), eps * eps))
    q = fn * inv_t
    k = fn
    if use_bf16:
        q = q.astype(jnp.bfloat16)
        k = k.astype(jnp.bfloat16)
    sim = lax.dot_general(q, k, (((1,), (1,)), ((), ())),
                          preferred_element_type=jnp.float32)
    sim = jnp.where(jnp.eye(n, dtype=bool), jnp.float32(_NEG_INF), sim)
    m = jnp.max(sim, axis=-1, keepdims=True)
    lse = m + jnp.log(jnp.sum(jnp.exp(sim - m), axis=-1, keepdims=True))
    pos = jnp.sum(fn * jnp.roll(fn, b, axis=0), axis=-1, keepdims=True) * inv_t
    return jnp.mean(lse - pos)


if __name__ == "__main__":
    key = jax.random.PRNGKey(0)
    k1, k2 = jax.random.split(key)

    B, D = 8, 32
    temperature = 0.5

    z_i = jax.random.normal(k1, (B, D), dtype=jnp.float32)
    z_j = jax.random.normal(k2, (B, D), dtype=jnp.float32)

    loss = jax.block_until_ready(ntxent_loss(z_i, z_j, temperature))
    ref_bf16 = jax.block_until_ready(
        _ntxent_reference(z_i, z_j, temperature, use_bf16=True))
    ref_f32 = jax.block_until_ready(
        _ntxent_reference(z_i, z_j, temperature, use_bf16=False))

    assert loss.shape == ()
    assert bool(jnp.isfinite(loss))
    # tight parity vs. the bf16-mirrored reference, loose vs. the exact f32 one
    assert abs(float(loss) - float(ref_bf16)) < 5e-3, (float(loss), float(ref_bf16))
    assert abs(float(loss) - float(ref_f32)) < 5e-2, (float(loss), float(ref_f32))

    print("KERNEL_OK")
</pallas_src>

<mosaic_0001>
module attributes {stable_mosaic.version = 11 : i64} {
  func.func @_ntxent_lse_kernel(%arg0: i32, %arg1: i32, %arg2: memref<16x128xbf16, #tpu.memory_space<vmem>>, %arg3: memref<16x128xbf16, #tpu.memory_space<vmem>>, %arg4: memref<16x1xf32, #tpu.memory_space<vmem>>, %arg5: memref<16x1xf32, #tpu.memory_space<vmem>>, %arg6: memref<16x1xf32, #tpu.memory_space<vmem>>) attributes {dimension_semantics = [#tpu.dimension_semantics<parallel>, #tpu.dimension_semantics<arbitrary>], iteration_bounds = array<i64: 1, 1>, scalar_prefetch = 0 : i64, scratch_operands = 2 : i64, tpu.core_type = #tpu.core_type<tc>, window_params = [{transform_indices = @transform_0, window_bounds = array<i64: 16, 128>}, {transform_indices = @transform_1, window_bounds = array<i64: 16, 128>}, {transform_indices = @transform_2, window_bounds = array<i64: 16, 1>}]} {
    %c0_i32 = arith.constant 0 : i32
    %0 = arith.cmpi eq, %arg1, %c0_i32 : i32
    %1 = arith.extui %0 : i1 to i32
    %c0_i32_0 = arith.constant 0 : i32
    %2 = arith.cmpi ne, %1, %c0_i32_0 : i32
    scf.if %2 {
      %cst_18 = arith.constant 0xFF800000 : f32
      %36 = vector.broadcast %cst_18 : f32 to vector<16x1xf32>
      %c0_19 = arith.constant 0 : index
      %c0_20 = arith.constant 0 : index
      %37 = vector.load %arg5[%c0_19, %c0_20] : memref<16x1xf32, #tpu.memory_space<vmem>>, vector<16x1xf32>
      tpu.vector_store %arg5[%c0_19, %c0_20], %36 {strides = array<i32>} : memref<16x1xf32, #tpu.memory_space<vmem>>, vector<16x1xf32>,
      %cst_21 = arith.constant 0.000000e+00 : f32
      %38 = vector.broadcast %cst_21 : f32 to vector<16x1xf32>
      %c0_22 = arith.constant 0 : index
      %c0_23 = arith.constant 0 : index
      %39 = vector.load %arg6[%c0_22, %c0_23] : memref<16x1xf32, #tpu.memory_space<vmem>>, vector<16x1xf32>
      tpu.vector_store %arg6[%c0_22, %c0_23], %38 {strides = array<i32>} : memref<16x1xf32, #tpu.memory_space<vmem>>, vector<16x1xf32>,
    } else {
    }
    %c0 = arith.constant 0 : index
    %c0_1 = arith.constant 0 : index
    %3 = vector.load %arg2[%c0, %c0_1] : memref<16x128xbf16, #tpu.memory_space<vmem>>, vector<16x128xbf16>
    %c0_2 = arith.constant 0 : index
    %c0_3 = arith.constant 0 : index
    %4 = vector.load %arg3[%c0_2, %c0_3] : memref<16x128xbf16, #tpu.memory_space<vmem>>, vector<16x128xbf16>
    %cst = arith.constant dense<0.000000e+00> : vector<16x16xf32>
    %5 = tpu.matmul %3, %4, %cst {dimension_numbers = #tpu.dot_dimension_numbers<[1], [1], [0], [0], [0, 0, 1, 0], [], []>} : vector<16x128xbf16>, vector<16x128xbf16>, vector<16x16xf32> -> vector<16x16xf32>
    %c16_i32 = arith.constant 16 : i32
    %6 = arith.muli %arg0, %c16_i32 : i32
    %7 = tpu.iota {dimensions = array<i32: 0>} : vector<16x16xi32>
    %8 = vector.broadcast %6 : i32 to vector<16x16xi32>
    %9 = arith.addi %8, %7 : vector<16x16xi32>
    %c16_i32_4 = arith.constant 16 : i32
    %10 = arith.muli %arg1, %c16_i32_4 : i32
    %11 = tpu.iota {dimensions = array<i32: 1>} : vector<16x16xi32>
    %12 = vector.broadcast %10 : i32 to vector<16x16xi32>
    %13 = arith.addi %12, %11 : vector<16x16xi32>
    %14 = arith.cmpi eq, %9, %13 : vector<16x16xi32>
    %cst_5 = arith.constant -1.000000e+30 : f32
    %15 = vector.broadcast %cst_5 : f32 to vector<16x16xf32>
    %16 = arith.select %14, %15, %5 : vector<16x16xi1>, vector<16x16xf32>
    %c0_6 = arith.constant 0 : index
    %c0_7 = arith.constant 0 : index
    %17 = vector.load %arg5[%c0_6, %c0_7] : memref<16x1xf32, #tpu.memory_space<vmem>>, vector<16x1xf32>
    %cst_8 = arith.constant dense<0xFF800000> : vector<16xf32>
    %18 = vector.multi_reduction <maximumf>, %16, %cst_8 [1] : vector<16x16xf32> to vector<16xf32>
    %19 = vector.shape_cast %18 : vector<16xf32> to vector<16x1xf32>
    %20 = arith.maximumf %17, %19 : vector<16x1xf32>
    %21 = arith.subf %17, %20 : vector<16x1xf32>
    %22 = math.exp %21 : vector<16x1xf32>
    %c0_9 = arith.constant 0 : index
    %c0_10 = arith.constant 0 : index
    %23 = vector.load %arg6[%c0_9, %c0_10] : memref<16x1xf32, #tpu.memory_space<vmem>>, vector<16x1xf32>
    %24 = arith.mulf %22, %23 : vector<16x1xf32>
    %25 = vector.broadcast %20 : vector<16x1xf32> to vector<16x16xf32>
    %26 = arith.subf %16, %25 : vector<16x16xf32>
    %27 = math.exp %26 : vector<16x16xf32>
    %cst_11 = arith.constant dense<0.000000e+00> : vector<16xf32>
    %28 = vector.multi_reduction <add>, %27, %cst_11 [1] : vector<16x16xf32> to vector<16xf32>
    %29 = vector.shape_cast %28 : vector<16xf32> to vector<16x1xf32>
    %30 = arith.addf %24, %29 : vector<16x1xf32>
    %c0_12 = arith.constant 0 : index
    %c0_13 = arith.constant 0 : index
    %31 = vector.load %arg6[%c0_12, %c0_13] : memref<16x1xf32, #tpu.memory_space<vmem>>, vector<16x1xf32>
    tpu.vector_store %arg6[%c0_12, %c0_13], %30 {strides = array<i32>} : memref<16x1xf32, #tpu.memory_space<vmem>>, vector<16x1xf32>,
    %c0_14 = arith.constant 0 : index
    %c0_15 = arith.constant 0 : index
    %32 = vector.load %arg5[%c0_14, %c0_15] : memref<16x1xf32, #tpu.memory_space<vmem>>, vector<16x1xf32>
    tpu.vector_store %arg5[%c0_14, %c0_15], %20 {strides = array<i32>} : memref<16x1xf32, #tpu.memory_space<vmem>>, vector<16x1xf32>,
    %c0_i32_16 = arith.constant 0 : i32
    %33 = arith.cmpi eq, %arg1, %c0_i32_16 : i32
    %34 = arith.extui %33 : i1 to i32
    %c0_i32_17 = arith.constant 0 : i32
    %35 = arith.cmpi ne, %34, %c0_i32_17 : i32
    scf.if %35 {
      %c0_18 = arith.constant 0 : index
      %c0_19 = arith.constant 0 : index
      %36 = vector.load %arg5[%c0_18, %c0_19] : memref<16x1xf32, #tpu.memory_space<vmem>>, vector<16x1xf32>
      %c0_20 = arith.constant 0 : index
      %c0_21 = arith.constant 0 : index
      %37 = vector.load %arg6[%c0_20, %c0_21] : memref<16x1xf32, #tpu.memory_space<vmem>>, vector<16x1xf32>
      %38 = math.log %37 : vector<16x1xf32>
      %39 = arith.addf %36, %38 : vector<16x1xf32>
      %c0_22 = arith.constant 0 : index
      %c0_23 = arith.constant 0 : index
      %40 = vector.load %arg4[%c0_22, %c0_23] : memref<16x1xf32, #tpu.memory_space<vmem>>, vector<16x1xf32>
      tpu.vector_store %arg4[%c0_22, %c0_23], %39 {strides = array<i32>} : memref<16x1xf32, #tpu.memory_space<vmem>>, vector<16x1xf32>,
    } else {
    }
    return
  }
  func.func @transform_0(%arg0: i32, %arg1: i32) -> (i32, i32) {
    %c0_i32 = arith.constant 0 : i32
    %c0_i32_0 = arith.constant 0 : i32
    return %arg0, %c0_i32 : i32, i32
  }
  func.func @transform_1(%arg0: i32, %arg1: i32) -> (i32, i32) {
    %c0_i32 = arith.constant 0 : i32
    %c0_i32_0 = arith.constant 0 : i32
    return %arg1, %c0_i32 : i32, i32
  }
  func.func @transform_2(%arg0: i32, %arg1: i32) -> (i32, i32) {
    %c0_i32 = arith.constant 0 : i32
    %c0_i32_0 = arith.constant 0 : i32
    return %arg0, %c0_i32 : i32, i32
  }
}

</mosaic_0001>

<llo_original>
// kernel: ntxent_loss.1
$region0: #{ntxent_loss.1}
  #allocation0 [shape = 'u32[]', space=smem, size = 0x4, offset = 0x4, fixed_abs, tag = 'smem constant byte address 0x4 - core index']
  #allocation1 [shape = 'u32[72,128]{1,0:T(1,128)}', space=vmem, size = 0x9000, scoped, tag = 'internal scratch']
  #allocation2 [shape = 'f32[16,1]{1,0:T(8,128)}', space=vmem, size = 0x2000, scoped, tag = 'scratch operand']
  #allocation3 [shape = 'f32[16,1]{1,0:T(8,128)}', space=vmem, size = 0x2000, scoped, tag = 'scratch operand']
  %s0 = inlined_call_operand.vmem [shape: bf16[16,128], index: 0, kind: input, shape index: {}]
  %s1 = inlined_call_operand.vmem [shape: bf16[16,128], index: 1, kind: input, shape index: {}]
  %s2 = inlined_call_operand.vmem [shape: f32[16,1], index: 2, kind: output, shape index: {}]
  %s3 = sld [smem:[#allocation0]]
  $region26: #{ntxent_loss.1} parent=0
    _
  %s5 = ssub.s32 1, %s3
  %s6 = scalar_select 0, %s5, %s3
  // Predicated region
  $region2: #{ntxent_loss.1} parent=0 // pred_check
    _
  $region3: #{ntxent_loss.1} parent=0 // pred_check_branch
    %8 = sbr.rel (0) target = $region5
  $region4: #{ntxent_loss.1} parent=0 // pred_region
    _
  $region5: #{ntxent_loss.1} parent=0 // pred_fallthru
    _
  // Predicated region
  $region6: #{ntxent_loss.1} parent=0 // pred_check
    _
  $region7: #{ntxent_loss.1} parent=0 // pred_check_branch
    %10 = sbr.rel (0) target = $region9
  $region8: #{ntxent_loss.1} parent=0 // pred_region
    _
  $region9: #{ntxent_loss.1} parent=0 // pred_fallthru
    _
  %p12 = scmp.eq.s32.totalorder 0, 0
  // Predicated region
  $region10: #{ntxent_loss.1} parent=0 // pred_check
    %p13 = pneg %p12
  $region11: #{ntxent_loss.1} parent=0 // pred_check_branch
    %15 = sbr.rel (%p13) target = $region13
  $region12: #{ntxent_loss.1} parent=0 // pred_region
    %vm16 = vcmask 7168
    %17 = vst.msk [vmem:[#allocation2] sm:$0xff] %vm16, -inf
    %18 = vst.msk [vmem:[#allocation2 + $0x8] sm:$0xff] %vm16, -inf
    %19 = vst.msk [vmem:[#allocation3] sm:$0xff] %vm16, 0.0
    %20 = vst.msk [vmem:[#allocation3 + $0x8] sm:$0xff] %vm16, 0.0
  $region13: #{ntxent_loss.1} parent=0 // pred_fallthru
    _
  %v21 = vld [vmem:[%s0] sm:$0xf]
  %v22 = vld [vmem:[%s0 + $0x4] sm:$0xf]
  %v23 = vld [vmem:[%s1] sm:$0xf]
  %v24 = vld [vmem:[%s1 + $0x4] sm:$0xf]
  %v27 = vunpack.c.l.b16 %v21
  %v28 = vunpack.c.l.b16 %v22
  %v29 = vpack.c.b16 %v28, %v27
  %v33 = vunpack.c.l.b16 %v23
  %v34 = vunpack.c.l.b16 %v24
  %v35 = vpack.c.b16 %v34, %v33
  %37 = vmatpush.bf16.xpose.msra.mxu0 0
  %38 = vmatpush.bf16.xpose.msra.mxu0 0
  %39 = vmatpush.bf16.xpose.msra.mxu0 0
  %40 = vmatpush.bf16.xpose.msra.mxu0 0
  %41 = vmatpush.bf16.xpose.msra.mxu0 0
  %42 = vmatpush.bf16.xpose.msra.mxu0 0
  %43 = vmatpush.bf16.xpose.msra.mxu0 0
  %44 = vmatpush.bf16.xpose.msra.mxu0 %v35
  %45 = vmatmul.bf16.gmra.mxu0 %v29
  %v46 = vpop.f32.mrf.mxu0
  %v47 = vadd.f32 0.0, %v46
  %v48 = vpop.f32.mrf.mxu0
  %v49 = vadd.f32 0.0, %v48
  %50 = vdwg.mxu0
  %s51 = smul.u32 0, 16
  %v52 = vlaneseq
  %v53 = vshrl.u32 %v52, 7
  %v54 = vadd.s32 %v53, 8
  %v55 = vstv %s51
  %v56 = vadd.s32 %v55, %v53
  %v57 = vadd.s32 %v55, %v54
  %s58 = smul.u32 0, 16
  %v59 = vlaneseq
  %v60 = vand.u32 %v59, 127
  %v61 = vstv %s58
  %v62 = vadd.s32 %v61, %v60
  %vm63 = vcmp.eq.s32.totalorder %v56, %v62
  %vm64 = vcmp.eq.s32.totalorder %v57, %v62
  %v65 = vsel %vm63, -1e+30, %v47
  %v66 = vsel %vm64, -1e+30, %v49
  %v67 = vld [vmem:[#allocation2] sm:$0xff]
  %v68 = vld [vmem:[#allocation2 + $0x8] sm:$0xff]
  %vm69 = vcmask 130048
  %v70 = vsel %vm69, %v65, -inf
  %71 = vmax.xlane.f32.xlu0 %v70
  %v72 = vpop.xlane.xlu0 %71
  %v73 = vsel %vm69, %v66, -inf
  %74 = vmax.xlane.f32.xlu0 %v73
  %v75 = vpop.xlane.xlu0 %74
  %v76 = vmax.f32 %v67, %v72
  %v77 = vmax.f32 %v68, %v75
  %v78 = vsub.f32 %v67, %v76
  %v79 = vsub.f32 %v68, %v77
  %v80 = vmul.f32 %v78, 1.442695
  %v81 = vpow.pop %v80
  %v82 = vmul.f32 %v79, 1.442695
  %v83 = vpow.pop %v82
  %v84 = vld [vmem:[#allocation3] sm:$0xff]
  %v85 = vld [vmem:[#allocation3 + $0x8] sm:$0xff]
  %v86 = vmul.f32 %v81, %v84
  %v87 = vmul.f32 %v83, %v85
  %89 = vset.pattern.permute.xlu0 0
  %90 = vperm.xlu0 %89, %v76
  %v91 = vpop.permute.xlu0 %90
  %94 = vset.pattern.permute.xlu0 0
  %95 = vperm.xlu0 %94, %v77
  %v96 = vpop.permute.xlu0 %95
  %v98 = vsub.f32 %v65, %v91
  %v99 = vsub.f32 %v66, %v96
  %v100 = vmul.f32 %v98, 1.442695
  %v101 = vpow.pop %v100
  %v102 = vmul.f32 %v99, 1.442695
  %v103 = vpow.pop %v102
  %v104 = vsel %vm69, %v101, 0.0
  %105 = vadd.xlane.f32.xlu0 %v104
  %v106 = vpop.xlane.xlu0 %105
  %v107 = vsel %vm69, %v103, 0.0
  %108 = vadd.xlane.f32.xlu0 %v107
  %v109 = vpop.xlane.xlu0 %108
  %v110 = vadd.f32 %v86, %v106
  %v111 = vadd.f32 %v87, %v109
  %vm112 = vcmask 7168
  %113 = vst.msk [vmem:[#allocation3] sm:$0xff] %vm112, %v110
  %114 = vst.msk [vmem:[#allocation3 + $0x8] sm:$0xff] %vm112, %v111
  %115 = vst.msk [vmem:[#allocation2] sm:$0xff] %vm112, %v76
  %116 = vst.msk [vmem:[#allocation2 + $0x8] sm:$0xff] %vm112, %v77
  // Predicated region
  $region14: #{ntxent_loss.1} parent=0 // pred_check
    %p117 = pneg %p12
  $region15: #{ntxent_loss.1} parent=0 // pred_check_branch
    %119 = sbr.rel (%p117) target = $region17
  $region16: #{ntxent_loss.1} parent=0 // pred_region
    %v120 = vld [vmem:[#allocation2] sm:$0xff]
    %v121 = vld [vmem:[#allocation2 + $0x8] sm:$0xff]
    %v122 = vld [vmem:[#allocation3] sm:$0xff]
    %v123 = vld [vmem:[#allocation3 + $0x8] sm:$0xff]
    %v124 = vlog2.pop %v122
    %v125 = vmul.f32 %v124, 0.6931472
    %v126 = vlog2.pop %v123
    %v127 = vmul.f32 %v126, 0.6931472
    %v128 = vadd.f32 %v120, %v125
    %v129 = vadd.f32 %v121, %v127
    %130 = vst.msk [vmem:[%s2] sm:$0xff] %vm112, %v128
    %131 = vst.msk [vmem:[%s2 + $0x8] sm:$0xff] %vm112, %v129
  $region17: #{ntxent_loss.1} parent=0 // pred_fallthru
    _
  // Predicated region
  $region18: #{ntxent_loss.1} parent=0 // pred_check
    _
  $region19: #{ntxent_loss.1} parent=0 // pred_check_branch
    %133 = sbr.rel (0) target = $region21
  $region20: #{ntxent_loss.1} parent=0 // pred_region
    _
  $region21: #{ntxent_loss.1} parent=0 // pred_fallthru
    _
  // Predicated region
  $region22: #{ntxent_loss.1} parent=0 // pred_check
    _
  $region23: #{ntxent_loss.1} parent=0 // pred_check_branch
    %135 = sbr.rel (0) target = $region25
  $region24: #{ntxent_loss.1} parent=0 // pred_region
    _
  $region25: #{ntxent_loss.1} parent=0 // pred_fallthru
    _

</llo_original>
